<compile_context>
chip_gen: v7x
topology: tpu7x:2x2x1
jax: 0.10.0
libtpu: 0.0.40
codegen_flags: <defaults>
</compile_context>

<pallas_src>
import jax
import jax.numpy as jnp
from jax.experimental import pallas as pl
from jax.experimental.pallas import tpu as pltpu


def _head_kernel(p_ref, w_ref, b_ref, o_ref):
    """Fused im2col conv head: one matmul + bias + SiLU, lane-dense output.

    p_ref : (1, K, HW)   bf16  im2col patches for one batch element
    w_ref : (Cout, K)    bf16  3x3 conv weights, pre-transposed
    b_ref : (Cout, 1)    f32   bias (broadcast over lanes)
    o_ref : (1, Cout, HW) f32  YOLO-style predictions (channels, anchors)
    """
    z = jnp.dot(w_ref[...], p_ref[0], preferred_element_type=jnp.float32)
    z = z + b_ref[...]                       # (Cout, HW) + (Cout, 1)
    o_ref[0] = (z * jax.nn.sigmoid(z)).astype(o_ref.dtype)   # SiLU


def conv_head_pallas(patches, w_t, bias):
    """patches: (B, K, HW) bf16; w_t: (Cout, K) bf16; bias: (Cout, 1) f32."""
    B, K, HW = patches.shape
    Cout = w_t.shape[0]
    return pl.pallas_call(
        _head_kernel,
        out_shape=jax.ShapeDtypeStruct((B, Cout, HW), jnp.float32),
        grid_spec=pltpu.PrefetchScalarGridSpec(
            num_scalar_prefetch=0,
            grid=(B,),
            in_specs=[
                pl.BlockSpec((1, K, HW), lambda b: (b, 0, 0)),
                pl.BlockSpec((Cout, K), lambda b: (0, 0)),
                pl.BlockSpec((Cout, 1), lambda b: (0, 0)),
            ],
            out_specs=pl.BlockSpec((1, Cout, HW), lambda b: (b, 0, 0)),
        ),
        compiler_params=pltpu.CompilerParams(
            dimension_semantics=("parallel",),
        ),
    )(patches, w_t, bias)


def _forward_impl(w_t, bias, x_nchw):
    """Synthetic wrapped model: returns (preds, feats) like YOLO."""
    B, C, H, W = x_nchw.shape
    # im2col directly from NCHW (fused by XLA into one gather/concat region):
    # channel index k = (dy*3 + dx)*C + ci  — tap-major, cin-minor.
    x_pad = jnp.pad(x_nchw, ((0, 0), (0, 0), (1, 1), (1, 1)))
    taps = [x_pad[:, :, dy:dy + H, dx:dx + W]
            for dy in range(3) for dx in range(3)]
    patches = jnp.concatenate(taps, axis=1).reshape(B, 9 * C, H * W)
    patches = patches.astype(jnp.bfloat16)

    preds = conv_head_pallas(patches, w_t, bias)   # (B, 4+nc, num_anchors)
    feats = x_nchw                                 # stand-in for feature list
    return preds, feats


class WorldModelWrapperPallas:
    """JAX/Pallas counterpart of WorldModelWrapper.forward: model(x)[0][0]."""

    def __init__(self, cin, cout, key):
        k_w, k_b = jax.random.split(key)
        w = jax.random.normal(k_w, (3, 3, cin, cout), jnp.float32)
        w = w * (1.0 / jnp.sqrt(9.0 * cin))
        self.w_hwio = w                                   # f32 reference copy
        # (Cout, 9*Cin): K index = (ky*3 + kx)*Cin + ci, matching the im2col.
        self.w_t = jnp.transpose(w.reshape(9 * cin, cout)).astype(jnp.bfloat16)
        self.bias = jax.random.normal(k_b, (cout, 1), jnp.float32) * 0.1
        self._model = jax.jit(_forward_impl)

    def forward(self, x_nchw):
        # Exactly mirrors the PyTorch wrapper: self.model(x)[0][0]
        return self._model(self.w_t, self.bias, x_nchw)[0][0]

    __call__ = forward


if __name__ == "__main__":
    key = jax.random.PRNGKey(0)
    k_x, k_p = jax.random.split(key)

    B, CIN, H, W = 2, 8, 16, 16
    NC = 60                      # classes -> Cout = 4 + nc = 64
    COUT = 4 + NC

    x = jax.random.normal(k_x, (B, CIN, H, W), jnp.float32)  # NCHW, like torch

    model = WorldModelWrapperPallas(CIN, COUT, k_p)
    out = jax.block_until_ready(model(x))

    assert out.shape == (COUT, H * W), out.shape
    assert bool(jnp.all(jnp.isfinite(out)))

    # Pure-JAX f32 reference (conv + bias + SiLU) for sanity (bf16 tolerance).
    w_oihw = jnp.transpose(model.w_hwio, (3, 2, 0, 1))
    ref = jax.lax.conv_general_dilated(
        x, w_oihw, window_strides=(1, 1), padding="SAME",
        dimension_numbers=("NCHW", "OIHW", "NCHW"))
    ref = ref + model.bias.reshape(1, COUT, 1, 1)
    ref = ref * jax.nn.sigmoid(ref)
    ref0 = ref[0].reshape(COUT, H * W)
    err = float(jnp.max(jnp.abs(out - ref0)))
    assert err < 0.1, f"max abs err {err}"

    print("KERNEL_OK")
</pallas_src>

<mosaic_0001>
module attributes {stable_mosaic.version = 11 : i64} {
  func.func @_head_kernel(%arg0: i32, %arg1: memref<1x72x256xbf16, #tpu.memory_space<vmem>>, %arg2: memref<64x72xbf16, #tpu.memory_space<vmem>>, %arg3: memref<64x1xf32, #tpu.memory_space<vmem>>, %arg4: memref<1x64x256xf32, #tpu.memory_space<vmem>>) attributes {dimension_semantics = [#tpu.dimension_semantics<parallel>], iteration_bounds = array<i64: 2>, scalar_prefetch = 0 : i64, scratch_operands = 0 : i64, tpu.core_type = #tpu.core_type<tc>, window_params = [{transform_indices = @transform_0, window_bounds = array<i64: 1, 72, 256>}, {pipeline_mode = #tpu.pipeline_mode<synchronous>, transform_indices = @transform_1, window_bounds = array<i64: 64, 72>}, {pipeline_mode = #tpu.pipeline_mode<synchronous>, transform_indices = @transform_2, window_bounds = array<i64: 64, 1>}, {transform_indices = @transform_3, window_bounds = array<i64: 1, 64, 256>}]} {
    %c0 = arith.constant 0 : index
    %c0_0 = arith.constant 0 : index
    %0 = vector.load %arg2[%c0, %c0_0] : memref<64x72xbf16, #tpu.memory_space<vmem>>, vector<64x72xbf16>
    %c0_1 = arith.constant 0 : index
    %c0_2 = arith.constant 0 : index
    %c0_3 = arith.constant 0 : index
    %1 = vector.load %arg1[%c0_1, %c0_2, %c0_3] : memref<1x72x256xbf16, #tpu.memory_space<vmem>>, vector<1x72x256xbf16>
    %2 = vector.shape_cast %1 : vector<1x72x256xbf16> to vector<72x256xbf16>
    %cst = arith.constant dense<0.000000e+00> : vector<64x256xf32>
    %3 = tpu.matmul %0, %2, %cst {dimension_numbers = #tpu.dot_dimension_numbers<[1], [0], [0], [1], [0, 0, 1, 1], [], []>} : vector<64x72xbf16>, vector<72x256xbf16>, vector<64x256xf32> -> vector<64x256xf32>
    %c0_4 = arith.constant 0 : index
    %c0_5 = arith.constant 0 : index
    %4 = vector.load %arg3[%c0_4, %c0_5] : memref<64x1xf32, #tpu.memory_space<vmem>>, vector<64x1xf32>
    %5 = vector.broadcast %4 : vector<64x1xf32> to vector<64x256xf32>
    %6 = arith.addf %3, %5 : vector<64x256xf32>
    %7 = arith.negf %6 : vector<64x256xf32>
    %8 = math.exp %7 : vector<64x256xf32>
    %cst_6 = arith.constant 1.000000e+00 : f32
    %9 = vector.broadcast %cst_6 : f32 to vector<64x256xf32>
    %10 = arith.addf %9, %8 : vector<64x256xf32>
    %11 = arith.divf %9, %10 : vector<64x256xf32>
    %12 = arith.mulf %6, %11 : vector<64x256xf32>
    %c0_7 = arith.constant 0 : index
    %c0_8 = arith.constant 0 : index
    %c0_9 = arith.constant 0 : index
    %13 = vector.load %arg4[%c0_7, %c0_8, %c0_9] : memref<1x64x256xf32, #tpu.memory_space<vmem>>, vector<1x64x256xf32>
    %14 = vector.shape_cast %13 : vector<1x64x256xf32> to vector<64x256xf32>
    %15 = vector.shape_cast %12 : vector<64x256xf32> to vector<1x64x256xf32>
    tpu.vector_store %arg4[%c0_7, %c0_8, %c0_9], %15 {strides = array<i32>} : memref<1x64x256xf32, #tpu.memory_space<vmem>>, vector<1x64x256xf32>,
    return
  }
  func.func @transform_0(%arg0: i32) -> (i32, i32, i32) {
    %c0_i32 = arith.constant 0 : i32
    %c0_i32_0 = arith.constant 0 : i32
    %c0_i32_1 = arith.constant 0 : i32
    return %arg0, %c0_i32, %c0_i32_0 : i32, i32, i32
  }
  func.func @transform_1(%arg0: i32) -> (i32, i32) {
    %c0_i32 = arith.constant 0 : i32
    %c0_i32_0 = arith.constant 0 : i32
    %c0_i32_1 = arith.constant 0 : i32
    return %c0_i32, %c0_i32_0 : i32, i32
  }
  func.func @transform_2(%arg0: i32) -> (i32, i32) {
    %c0_i32 = arith.constant 0 : i32
    %c0_i32_0 = arith.constant 0 : i32
    %c0_i32_1 = arith.constant 0 : i32
    return %c0_i32, %c0_i32_0 : i32, i32
  }
  func.func @transform_3(%arg0: i32) -> (i32, i32, i32) {
    %c0_i32 = arith.constant 0 : i32
    %c0_i32_0 = arith.constant 0 : i32
    %c0_i32_1 = arith.constant 0 : i32
    return %arg0, %c0_i32, %c0_i32_0 : i32, i32, i32
  }
}

</mosaic_0001>

<llo_original>
// kernel: _forward_impl.1
$region0: #{_forward_impl.1}
  #allocation0 [shape = 'u32[]', space=smem, size = 0x4, offset = 0x4, fixed_abs, tag = 'smem constant byte address 0x4 - core index']
  #allocation1 [shape = 'u32[144,128]{1,0:T(1,128)}', space=vmem, size = 0x12000, scoped, tag = 'internal scratch']
  %s0 = inlined_call_operand.vmem [shape: bf16[2,72,256], index: 0, kind: input, shape index: {}]
  %s1 = inlined_call_operand.vmem [shape: bf16[64,72], index: 1, kind: input, shape index: {}]
  %s2 = inlined_call_operand.vmem [shape: f32[64,1], index: 2, kind: input, shape index: {}]
  %s3 = inlined_call_operand.hbm [shape: f32[2,64,256], index: 3, kind: output, shape index: {}]
  %s4 = sld [smem:[#allocation0]]
  $region45: #{_forward_impl.1} parent=0
    _
  %s6 = ssub.s32 1, %s4
  %s7 = scalar_select 0, %s6, %s4
  $region1: #{_forward_impl.1} parent=0
    #allocation2 [shape = 'u8[131072]{0}', space=vmem, size = 0x20000, scoped, tag = 'output window, operand 0']
    #allocation3 [shape = 's32[2]{0}', space=sflag, size = 0x8, scoped, tag = 'scoped memory for _forward_impl.1']
    %8 = vsyncpa [#allocation3], 0
    %s9 = scalar_lea.sflag [#allocation3], 1
    %10 = vsyncpa %s9, 0
    loop: start=0, step=1, limit=4
    $region2: #{_forward_impl.1} parent=1 // loop_pre_header
      _
    $region3: #{_forward_impl.1} parent=1 // loop_header
      %s12 = sphi 0, %s16
      %p13 = scmp.ge.s32.totalorder %s12, 4
      %s22 = sphi 0, %s24
      %s25 = sphi 0, %s22
      %s26 = sphi 0, %s25
      %s42 = sphi 0, %s26
      %s46 = sphi 0, %s46
      %s48 = sphi 0, %s46
      %s49 = sphi 0, %s48
      %s63 = sphi 0, %s49
      %s67 = sphi 0, %s67
      %s69 = sphi 0, %s67
      %s70 = sphi 0, %s69
      %s84 = sphi 0, %s70
      %s90 = sphi 0, %s92
      %s93 = sphi 0, %s90
      %s94 = sphi 0, %s93
      %s110 = sphi 0, %s94
    $region4: #{_forward_impl.1} parent=1 // loop_header_branch
      %15 = sbr.rel (%p13) target = $region8
    $region5: #{_forward_impl.1} parent=1 // loop_body
      %s17 = ssub.s32 %s12, 1
      %s18 = ssub.s32 %s12, 2
      %s19 = sadd.s32 %s12, 1
      %s20 = ssub.s32 %s12, %s19
      %p21 = scmp.eq.s32.totalorder %s20, 0
      %s23 = sadd.s32 %s22, 1
      %s24 = scalar_select %p21, %s22, %s23
      %p27 = pneg %p21
      %p28 = scmp.eq.s32.totalorder %s12, 1
      %p29 = por %p27, %p28
      %p30 = scmp.ne.s32.totalorder %s22, %s25
      %p31 = scmp.eq.s32.totalorder %s12, 0
      %p32 = por %p30, %p31
      %p33 = scmp.ne.s32.totalorder %s22, %s25
      %p34 = scmp.eq.s32.totalorder %s17, 1
      %p35 = por %p33, %p34
      %p36 = scmp.ne.s32.totalorder %s25, %s26
      %p37 = scmp.eq.s32.totalorder %s17, 0
      %p38 = por %p36, %p37
      %p39 = scmp.ne.s32.totalorder %s25, %s26
      %p40 = scmp.eq.s32.totalorder %s18, 1
      %p41 = por %p39, %p40
      %p43 = scmp.ne.s32.totalorder %s26, %s42
      %p44 = scmp.eq.s32.totalorder %s18, 0
      %p45 = por %p43, %p44
      %s47 = sadd.s32 %s46, 1
      %p50 = scmp.eq.s32.totalorder %s12, 1
      %p51 = scmp.ne.s32.totalorder %s46, %s48
      %p52 = scmp.eq.s32.totalorder %s12, 0
      %p53 = por %p51, %p52
      %p54 = scmp.ne.s32.totalorder %s46, %s48
      %p55 = scmp.eq.s32.totalorder %s17, 1
      %p56 = por %p54, %p55
      %p57 = scmp.ne.s32.totalorder %s48, %s49
      %p58 = scmp.eq.s32.totalorder %s17, 0
      %p59 = por %p57, %p58
      %p60 = scmp.ne.s32.totalorder %s48, %s49
      %p61 = scmp.eq.s32.totalorder %s18, 1
      %p62 = por %p60, %p61
      %p64 = scmp.ne.s32.totalorder %s49, %s63
      %p65 = scmp.eq.s32.totalorder %s18, 0
      %p66 = por %p64, %p65
      %s68 = sadd.s32 %s67, 1
      %p71 = scmp.eq.s32.totalorder %s12, 1
      %p72 = scmp.ne.s32.totalorder %s67, %s69
      %p73 = scmp.eq.s32.totalorder %s12, 0
      %p74 = por %p72, %p73
      %p75 = scmp.ne.s32.totalorder %s67, %s69
      %p76 = scmp.eq.s32.totalorder %s17, 1
      %p77 = por %p75, %p76
      %p78 = scmp.ne.s32.totalorder %s69, %s70
      %p79 = scmp.eq.s32.totalorder %s17, 0
      %p80 = por %p78, %p79
      %p81 = scmp.ne.s32.totalorder %s69, %s70
      %p82 = scmp.eq.s32.totalorder %s18, 1
      %p83 = por %p81, %p82
      %p85 = scmp.ne.s32.totalorder %s70, %s84
      %p86 = scmp.eq.s32.totalorder %s18, 0
      %p87 = por %p85, %p86
      %s88 = ssub.s32 %s12, %s19
      %p89 = scmp.eq.s32.totalorder %s88, 0
      %s91 = sadd.s32 %s90, 1
      %s92 = scalar_select %p89, %s90, %s91
      %p95 = pneg %p89
      %p96 = scmp.eq.s32.totalorder %s12, 1
      %p97 = por %p95, %p96
      %p98 = scmp.ne.s32.totalorder %s90, %s93
      %p99 = scmp.eq.s32.totalorder %s12, 0
      %p100 = por %p98, %p99
      %p101 = scmp.ne.s32.totalorder %s90, %s93
      %p102 = scmp.eq.s32.totalorder %s17, 1
      %p103 = por %p101, %p102
      %p104 = scmp.ne.s32.totalorder %s93, %s94
      %p105 = scmp.eq.s32.totalorder %s17, 0
      %p106 = por %p104, %p105
      %p107 = scmp.ne.s32.totalorder %s93, %s94
      %p108 = scmp.eq.s32.totalorder %s18, 1
      %p109 = por %p107, %p108
      %p111 = scmp.ne.s32.totalorder %s94, %s110
      %p112 = scmp.eq.s32.totalorder %s18, 0
      %p113 = por %p111, %p112
      %p114 = scmp.le.s32.totalorder 1, %s12
      %p115 = scmp.lt.s32.totalorder %s12, 3
      %p116 = pnand %p114, %p115
      %p117 = pneg %p116
      // Predicated region
      $region9: #{_forward_impl.1} parent=5 // pred_check
        _
      $region10: #{_forward_impl.1} parent=5 // pred_check_branch
        %119 = sbr.rel (%p116) target = $region12
      $region11: #{_forward_impl.1} parent=5 // pred_region
        %s120 = ssub.s32 %s12, 1
        // Predicated region
        $region13: #{_forward_impl.1} parent=11 // pred_check
          %p121 = pneg %p59
        $region14: #{_forward_impl.1} parent=11 // pred_check_branch
          %123 = sbr.rel (%p121) target = $region16
        $region15: #{_forward_impl.1} parent=11 // pred_region
          _
        $region16: #{_forward_impl.1} parent=11 // pred_fallthru
          _
        // Predicated region
        $region17: #{_forward_impl.1} parent=11 // pred_check
          %p124 = pneg %p80
        $region18: #{_forward_impl.1} parent=11 // pred_check_branch
          %126 = sbr.rel (%p124) target = $region20
        $region19: #{_forward_impl.1} parent=11 // pred_region
          _
        $region20: #{_forward_impl.1} parent=11 // pred_fallthru
          _
      $region12: #{_forward_impl.1} parent=5 // pred_fallthru
        _
      %p127 = scmp.lt.s32.totalorder %s12, 2
      // Predicated region
      $region21: #{_forward_impl.1} parent=5 // pred_check
        %p128 = pneg %p127
      $region22: #{_forward_impl.1} parent=5 // pred_check_branch
        %130 = sbr.rel (%p128) target = $region24
      $region23: #{_forward_impl.1} parent=5 // pred_region
        // Predicated region
        $region25: #{_forward_impl.1} parent=23 // pred_check
          %p131 = pneg %p32
        $region26: #{_forward_impl.1} parent=23 // pred_check_branch
          %133 = sbr.rel (%p131) target = $region28
        $region27: #{_forward_impl.1} parent=23 // pred_region
          %p134 = scmp.lt.s32.totalorder %s12, 1
          %s135 = scalar_select %p134, %s12, 1
          %s136 = smul.addr %s135, 18
          %s137 = smul.addr %s136, 4
          %s138 = scalar_lea.vmem %s0, %s137
        $region28: #{_forward_impl.1} parent=23 // pred_fallthru
          _
      $region24: #{_forward_impl.1} parent=5 // pred_fallthru
        _
      %p139 = scmp.le.s32.totalorder 1, %s12
      %p140 = scmp.lt.s32.totalorder %s12, 3
      %p141 = pnand %p139, %p140
      %p142 = pneg %p141
      // Predicated region
      $region29: #{_forward_impl.1} parent=5 // pred_check
        _
      $region30: #{_forward_impl.1} parent=5 // pred_check_branch
        %144 = sbr.rel (%p141) target = $region32
      $region31: #{_forward_impl.1} parent=5 // pred_region
        %s145 = ssub.s32 %s12, 1
        %p146 = scmp.lt.s32.totalorder %s17, 1
        %s147 = scalar_select %p146, %s17, 1
        %s148 = smul.addr %s147, 18
        %s149 = smul.addr %s148, 4
        %s150 = scalar_lea.vmem %s0, %s149
        %p151 = pneg %p38
        %p152 = pneg %p35
        %p153 = pneg %p59
        %p154 = pneg %p56
        %p155 = pneg %p80
        %p156 = pneg %p77
        %p157 = pneg %p106
        %p158 = pneg %p103
        %s159 = sand.u32 %s93, 1
        %s160 = scalar_lea.sflag [#allocation3], %s159
        %s161 = sand.u32 %s93, 1
        %s162 = smul.addr %s161, 128
        %s163 = scalar_lea.vmem [#allocation2], %s162
        %p164 = scmp.lt.s32.totalorder %s17, 1
        %s165 = scalar_select %p164, %s17, 1
        %s166 = smul.addr %s165, 18
        %s167 = smul.addr %s166, 4
        %s168 = scalar_lea.vmem %s0, %s167
        %v170 = vld [vmem:[%s1] sm:$0xf]
        %v171 = vld [vmem:[%s1 + $0x4] sm:$0xf]
        %v172 = vld [vmem:[%s1 + $0x8] sm:$0xf]
        %v173 = vld [vmem:[%s1 + $0xc] sm:$0xf]
        %v174 = vld [vmem:[%s1 + $0x10] sm:$0xf]
        %v175 = vld [vmem:[%s1 + $0x14] sm:$0xf]
        %v176 = vld [vmem:[%s1 + $0x18] sm:$0xf]
        %v177 = vld [vmem:[%s1 + $0x1c] sm:$0xf]
        %v178 = vld [vmem:[%s168] sm:$0xff]
        %v179 = vld [vmem:[%s168 + $0x8] sm:$0xff]
        %v180 = vld [vmem:[%s168 + $0x10] sm:$0xff]
        %v181 = vld [vmem:[%s168 + $0x18] sm:$0xff]
        %v182 = vld [vmem:[%s168 + $0x20] sm:$0xff]
        %v183 = vld [vmem:[%s168 + $0x28] sm:$0xff]
        %v184 = vld [vmem:[%s168 + $0x30] sm:$0xff]
        %v185 = vld [vmem:[%s168 + $0x38] sm:$0xff]
        %v186 = vld [vmem:[%s168 + $0x40] sm:$0xff]
        %v187 = vld [vmem:[%s2] sm:$0xff]
        %v188 = vld [vmem:[%s2 + $0x8] sm:$0xff]
        %v189 = vld [vmem:[%s2 + $0x10] sm:$0xff]
        %v190 = vld [vmem:[%s2 + $0x18] sm:$0xff]
        %v191 = vld [vmem:[%s2 + $0x20] sm:$0xff]
        %v192 = vld [vmem:[%s2 + $0x28] sm:$0xff]
        %v193 = vld [vmem:[%s2 + $0x30] sm:$0xff]
        %v194 = vld [vmem:[%s2 + $0x38] sm:$0xff]
        %196 = vset.pattern.permute.xlu0 0
        %197 = vperm.xlu0 %196, %v187
        %v198 = vpop.permute.xlu0 %197
        %201 = vset.pattern.permute.xlu0 0
        %202 = vperm.xlu0 %201, %v188
        %v203 = vpop.permute.xlu0 %202
        %206 = vset.pattern.permute.xlu0 0
        %207 = vperm.xlu0 %206, %v189
        %v208 = vpop.permute.xlu0 %207
        %211 = vset.pattern.permute.xlu0 0
        %212 = vperm.xlu0 %211, %v190
        %v213 = vpop.permute.xlu0 %212
        %216 = vset.pattern.permute.xlu0 0
        %217 = vperm.xlu0 %216, %v191
        %v218 = vpop.permute.xlu0 %217
        %221 = vset.pattern.permute.xlu0 0
        %222 = vperm.xlu0 %221, %v192
        %v223 = vpop.permute.xlu0 %222
        %226 = vset.pattern.permute.xlu0 0
        %227 = vperm.xlu0 %226, %v193
        %v228 = vpop.permute.xlu0 %227
        %231 = vset.pattern.permute.xlu0 0
        %232 = vperm.xlu0 %231, %v194
        %v233 = vpop.permute.xlu0 %232
        %v243 = vunpack.c.l.b16 %v170
        %v244 = vunpack.c.l.b16 %v171
        %v245 = vunpack.c.l.b16 %v172
        %v246 = vunpack.c.l.b16 %v173
        %v247 = vunpack.c.l.b16 %v174
        %v248 = vunpack.c.l.b16 %v175
        %v249 = vunpack.c.l.b16 %v176
        %v250 = vunpack.c.l.b16 %v177
        %v251 = vpack.c.b16 %v244, %v243
        %v252 = vpack.c.b16 %v246, %v245
        %v253 = vpack.c.b16 %v248, %v247
        %v254 = vpack.c.b16 %v250, %v249
        %v264 = vunpack.c.l.b16 %v178
        %v265 = vunpack.c.h.b16 %v178
        %v266 = vunpack.c.l.b16 %v179
        %v267 = vunpack.c.h.b16 %v179
        %v268 = vunpack.c.l.b16 %v180
        %v269 = vunpack.c.h.b16 %v180
        %v270 = vunpack.c.l.b16 %v181
        %v271 = vunpack.c.h.b16 %v181
        %v272 = vunpack.c.l.b16 %v182
        %v273 = vunpack.c.h.b16 %v182
        %v274 = vunpack.c.l.b16 %v183
        %v275 = vunpack.c.h.b16 %v183
        %v276 = vunpack.c.l.b16 %v184
        %v277 = vunpack.c.h.b16 %v184
        %v278 = vunpack.c.l.b16 %v185
        %v279 = vunpack.c.h.b16 %v185
        %v280 = vunpack.c.l.b16 %v186
        %v281 = vunpack.c.h.b16 %v186
        %v282 = vpack.c.b16 %v266, %v264
        %v283 = vpack.c.b16 %v267, %v265
        %v284 = vpack.c.b16 %v270, %v268
        %v285 = vpack.c.b16 %v271, %v269
        %v286 = vpack.c.b16 %v274, %v272
        %v287 = vpack.c.b16 %v275, %v273
        %v288 = vpack.c.b16 %v278, %v276
        %v289 = vpack.c.b16 %v279, %v277
        %v290 = vpack.c.b16 %v280, %v280
        %v291 = vpack.c.b16 %v281, %v281
        %vm300 = vcmask 588800
        %v302 = vsel %vm300, %v251, 0
        %v305 = vsel %vm300, %v252, 0
        %v308 = vsel %vm300, %v253, 0
        %v311 = vsel %vm300, %v254, 0
        %vm313 = vcmask 1043456
        %v315 = vsel %vm313, %v290, 0
        %v318 = vsel %vm313, %v291, 0
        %320 = vmatprep.subr.bf16.mxu0 %v283
        %321 = vmatpush1.bf16.msra.mxu0 %v282
        %322 = vmatprep.subr.bf16.mxu0 %v285
        %323 = vmatpush1.bf16.msra.mxu0 %v284
        %324 = vmatprep.subr.bf16.mxu0 %v287
        %325 = vmatpush1.bf16.msra.mxu0 %v286
        %326 = vmatprep.subr.bf16.mxu0 %v289
        %327 = vmatpush1.bf16.msra.mxu0 %v288
        %328 = vmatprep.subr.bf16.mxu0 %v318
        %329 = vmatpush1.bf16.msra.mxu0 %v315
        %330 = vmatprep.subr.bf16.mxu0 0
        %331 = vmatpush1.bf16.msra.mxu0 0
        %332 = vmatprep.subr.bf16.mxu0 0
        %333 = vmatpush1.bf16.msra.mxu0 0
        %334 = vmatprep.subr.bf16.mxu0 0
        %335 = vmatpush1.bf16.msra.mxu0 0
        %336 = vmatprep.subr.bf16.mxu0 0
        %337 = vmatpush1.bf16.msra.mxu0 0
        %338 = vmatprep.subr.bf16.mxu0 0
        %339 = vmatpush1.bf16.msra.mxu0 0
        %340 = vmatprep.subr.bf16.mxu0 0
        %341 = vmatpush1.bf16.msra.mxu0 0
        %342 = vmatprep.subr.bf16.mxu0 0
        %343 = vmatpush1.bf16.msra.mxu0 0
        %344 = vmatprep.subr.bf16.mxu0 0
        %345 = vmatpush1.bf16.msra.mxu0 0
        %346 = vmatprep.subr.bf16.mxu0 0
        %347 = vmatpush1.bf16.msra.mxu0 0
        %348 = vmatprep.subr.bf16.mxu0 0
        %349 = vmatpush1.bf16.msra.mxu0 0
        %350 = vmatprep.subr.bf16.mxu0 0
        %351 = vmatpush1.bf16.msra.mxu0 0
        %352 = vmatprep.mubr.bf16.mxu0 0
        %353 = vmatmul.mubr.bf16.gmra.mrb[0].mxu0 %v302
        %v354 = vpop.f32.mrb[0].mxu0
        %v355 = vadd.f32 %v198, %v354
        %v356 = vpop.f32.mrb[0].mxu0
        %v357 = vadd.f32 %v198, %v356
        %v358 = vpop.f32.mrb[0].mxu0
        %v359 = vadd.f32 %v203, %v358
        %v360 = vpop.f32.mrb[0].mxu0
        %v361 = vadd.f32 %v203, %v360
        %362 = vmatprep.mubr.bf16.mxu0 0
        %363 = vmatmul.mubr.bf16.gmra.mrb[0].mxu0 %v305
        %v364 = vpop.f32.mrb[0].mxu0
        %v365 = vadd.f32 %v208, %v364
        %v366 = vpop.f32.mrb[0].mxu0
        %v367 = vadd.f32 %v208, %v366
        %v368 = vpop.f32.mrb[0].mxu0
        %v369 = vadd.f32 %v213, %v368
        %v370 = vpop.f32.mrb[0].mxu0
        %v371 = vadd.f32 %v213, %v370
        %372 = vmatprep.mubr.bf16.mxu0 0
        %373 = vmatmul.mubr.bf16.gmra.mrb[0].mxu0 %v308
        %v374 = vpop.f32.mrb[0].mxu0
        %v375 = vadd.f32 %v218, %v374
        %v376 = vpop.f32.mrb[0].mxu0
        %v377 = vadd.f32 %v218, %v376
        %v378 = vpop.f32.mrb[0].mxu0
        %v379 = vadd.f32 %v223, %v378
        %v380 = vpop.f32.mrb[0].mxu0
        %v381 = vadd.f32 %v223, %v380
        %382 = vmatprep.mubr.bf16.mxu0 0
        %383 = vmatmul.mubr.bf16.gmra.mrb[0].mxu0 %v311
        %v384 = vpop.f32.mrb[0].mxu0
        %v385 = vadd.f32 %v228, %v384
        %v386 = vpop.f32.mrb[0].mxu0
        %v387 = vadd.f32 %v228, %v386
        %v388 = vpop.f32.mrb[0].mxu0
        %v389 = vadd.f32 %v233, %v388
        %v390 = vpop.f32.mrb[0].mxu0
        %v391 = vadd.f32 %v233, %v390
        %392 = vdwg.mxu0
        %v393 = vxor.u32 %v355, 2147483648
        %v394 = vxor.u32 %v357, 2147483648
        %v395 = vxor.u32 %v359, 2147483648
        %v396 = vxor.u32 %v361, 2147483648
        %v397 = vxor.u32 %v365, 2147483648
        %v398 = vxor.u32 %v367, 2147483648
        %v399 = vxor.u32 %v369, 2147483648
        %v400 = vxor.u32 %v371, 2147483648
        %v401 = vxor.u32 %v375, 2147483648
        %v402 = vxor.u32 %v377, 2147483648
        %v403 = vxor.u32 %v379, 2147483648
        %v404 = vxor.u32 %v381, 2147483648
        %v405 = vxor.u32 %v385, 2147483648
        %v406 = vxor.u32 %v387, 2147483648
        %v407 = vxor.u32 %v389, 2147483648
        %v408 = vxor.u32 %v391, 2147483648
        %v409 = vmul.f32 %v393, 1.442695
        %v410 = vpow.pop %v409
        %v411 = vmul.f32 %v394, 1.442695
        %v412 = vpow.pop %v411
        %v413 = vmul.f32 %v395, 1.442695
        %v414 = vpow.pop %v413
        %v415 = vmul.f32 %v396, 1.442695
        %v416 = vpow.pop %v415
        %v417 = vmul.f32 %v397, 1.442695
        %v418 = vpow.pop %v417
        %v419 = vmul.f32 %v398, 1.442695
        %v420 = vpow.pop %v419
        %v421 = vmul.f32 %v399, 1.442695
        %v422 = vpow.pop %v421
        %v423 = vmul.f32 %v400, 1.442695
        %v424 = vpow.pop %v423
        %v425 = vmul.f32 %v401, 1.442695
        %v426 = vpow.pop %v425
        %v427 = vmul.f32 %v402, 1.442695
        %v428 = vpow.pop %v427
        %v429 = vmul.f32 %v403, 1.442695
        %v430 = vpow.pop %v429
        %v431 = vmul.f32 %v404, 1.442695
        %v432 = vpow.pop %v431
        %v433 = vmul.f32 %v405, 1.442695
        %v434 = vpow.pop %v433
        %v435 = vmul.f32 %v406, 1.442695
        %v436 = vpow.pop %v435
        %v437 = vmul.f32 %v407, 1.442695
        %v438 = vpow.pop %v437
        %v439 = vmul.f32 %v408, 1.442695
        %v440 = vpow.pop %v439
        %v441 = vadd.f32 %v410, 1.0
        %v442 = vadd.f32 %v412, 1.0
        %v443 = vadd.f32 %v414, 1.0
        %v444 = vadd.f32 %v416, 1.0
        %v445 = vadd.f32 %v418, 1.0
        %v446 = vadd.f32 %v420, 1.0
        %v447 = vadd.f32 %v422, 1.0
        %v448 = vadd.f32 %v424, 1.0
        %v449 = vadd.f32 %v426, 1.0
        %v450 = vadd.f32 %v428, 1.0
        %v451 = vadd.f32 %v430, 1.0
        %v452 = vadd.f32 %v432, 1.0
        %v453 = vadd.f32 %v434, 1.0
        %v454 = vadd.f32 %v436, 1.0
        %v455 = vadd.f32 %v438, 1.0
        %v456 = vadd.f32 %v440, 1.0
        %v457 = vrcp.pop %v441
        %v458 = vmul.f32 1.0, %v457
        %v459 = vrcp.pop %v442
        %v460 = vmul.f32 1.0, %v459
        %v461 = vrcp.pop %v443
        %v462 = vmul.f32 1.0, %v461
        %v463 = vrcp.pop %v444
        %v464 = vmul.f32 1.0, %v463
        %v465 = vrcp.pop %v445
        %v466 = vmul.f32 1.0, %v465
        %v467 = vrcp.pop %v446
        %v468 = vmul.f32 1.0, %v467
        %v469 = vrcp.pop %v447
        %v470 = vmul.f32 1.0, %v469
        %v471 = vrcp.pop %v448
        %v472 = vmul.f32 1.0, %v471
        %v473 = vrcp.pop %v449
        %v474 = vmul.f32 1.0, %v473
        %v475 = vrcp.pop %v450
        %v476 = vmul.f32 1.0, %v475
        %v477 = vrcp.pop %v451
        %v478 = vmul.f32 1.0, %v477
        %v479 = vrcp.pop %v452
        %v480 = vmul.f32 1.0, %v479
        %v481 = vrcp.pop %v453
        %v482 = vmul.f32 1.0, %v481
        %v483 = vrcp.pop %v454
        %v484 = vmul.f32 1.0, %v483
        %v485 = vrcp.pop %v455
        %v486 = vmul.f32 1.0, %v485
        %v487 = vrcp.pop %v456
        %v488 = vmul.f32 1.0, %v487
        %v489 = vmul.f32 %v355, %v458
        %v490 = vmul.f32 %v357, %v460
        %v491 = vmul.f32 %v359, %v462
        %v492 = vmul.f32 %v361, %v464
        %v493 = vmul.f32 %v365, %v466
        %v494 = vmul.f32 %v367, %v468
        %v495 = vmul.f32 %v369, %v470
        %v496 = vmul.f32 %v371, %v472
        %v497 = vmul.f32 %v375, %v474
        %v498 = vmul.f32 %v377, %v476
        %v499 = vmul.f32 %v379, %v478
        %v500 = vmul.f32 %v381, %v480
        %v501 = vmul.f32 %v385, %v482
        %v502 = vmul.f32 %v387, %v484
        %v503 = vmul.f32 %v389, %v486
        %v504 = vmul.f32 %v391, %v488
        %505 = vst [vmem:[%s163] sm:$0xff] %v489
        %506 = vst [vmem:[%s163 + $0x8] sm:$0xff] %v490
        %507 = vst [vmem:[%s163 + $0x10] sm:$0xff] %v491
        %508 = vst [vmem:[%s163 + $0x18] sm:$0xff] %v492
        %509 = vst [vmem:[%s163 + $0x20] sm:$0xff] %v493
        %510 = vst [vmem:[%s163 + $0x28] sm:$0xff] %v494
        %511 = vst [vmem:[%s163 + $0x30] sm:$0xff] %v495
        %512 = vst [vmem:[%s163 + $0x38] sm:$0xff] %v496
        %513 = vst [vmem:[%s163 + $0x40] sm:$0xff] %v497
        %514 = vst [vmem:[%s163 + $0x48] sm:$0xff] %v498
        %515 = vst [vmem:[%s163 + $0x50] sm:$0xff] %v499
        %516 = vst [vmem:[%s163 + $0x58] sm:$0xff] %v500
        %517 = vst [vmem:[%s163 + $0x60] sm:$0xff] %v501
        %518 = vst [vmem:[%s163 + $0x68] sm:$0xff] %v502
        %519 = vst [vmem:[%s163 + $0x70] sm:$0xff] %v503
        %520 = vst [vmem:[%s163 + $0x78] sm:$0xff] %v504
        %s521 = sand.u32 %s93, 1
        %s522 = scalar_lea.sflag [#allocation3], %s521
        %s523 = sand.u32 %s93, 1
        %s524 = smul.addr %s523, 128
        %s525 = scalar_lea.vmem [#allocation2], %s524
        // Predicated region
        $region33: #{_forward_impl.1} parent=31 // pred_check
          %p526 = pneg %p103
        $region34: #{_forward_impl.1} parent=31 // pred_check_branch
          %528 = sbr.rel (%p526) target = $region36
        $region35: #{_forward_impl.1} parent=31 // pred_region
          %s530 = ssub.s32 2048, 2048
          %531 = vsyncadd %s522, %s530
          %s532 = smul.addr %s17, 16
          %s533 = smul.addr %s532, 128
          %s534 = scalar_lea.hbm %s3, %s533
          %s535 = sshll.u32 %s525, 4
          %s536 = int_to_ptr.vmem [resolvable:$true] %s535
          %541 = dma.vmem_to_hbm [thread:$0]  %s536, 2048, %s534, %s522, 256, 256, 16
        $region36: #{_forward_impl.1} parent=31 // pred_fallthru
          _
      $region32: #{_forward_impl.1} parent=5 // pred_fallthru
        _
      %p542 = scmp.le.s32.totalorder 2, %s12
      // Predicated region
      $region37: #{_forward_impl.1} parent=5 // pred_check
        %p543 = pneg %p542
      $region38: #{_forward_impl.1} parent=5 // pred_check_branch
        %545 = sbr.rel (%p543) target = $region40
      $region39: #{_forward_impl.1} parent=5 // pred_region
        %s546 = ssub.s32 %s12, 2
        // Predicated region
        $region41: #{_forward_impl.1} parent=39 // pred_check
          %p547 = pneg %p109
        $region42: #{_forward_impl.1} parent=39 // pred_check_branch
          %549 = sbr.rel (%p547) target = $region44
        $region43: #{_forward_impl.1} parent=39 // pred_region
          %s550 = sand.u32 %s94, 1
          %s551 = scalar_lea.sflag [#allocation3], %s550
          %s552 = sand.u32 %s94, 1
          %s553 = smul.addr %s552, 128
          %s554 = scalar_lea.vmem [#allocation2], %s553
          %555 = dma.done %s551, 2048
        $region44: #{_forward_impl.1} parent=39 // pred_fallthru
          _
      $region40: #{_forward_impl.1} parent=5 // pred_fallthru
        _
    $region6: #{_forward_impl.1} parent=1 // loop_footer
      %s16 = sadd.s32 1, %s12
    $region7: #{_forward_impl.1} parent=1 // loop_footer_branch
      %11 = sbr.rel target = $region3
    $region8: #{_forward_impl.1} parent=1 // loop_exit
      _
    %556 = vsyncpa [#allocation3], 1
    %s557 = scalar_lea.sflag [#allocation3], 1
    %558 = vsyncpa %s557, 1

</llo_original>
